<compile_context>
chip_gen: v5e
topology: v5e:2x2
jax: 0.10.0
libtpu: 0.0.40
codegen_flags: <defaults>
</compile_context>

<pallas_src>
import jax
import jax.numpy as jnp
from jax.experimental import pallas as pl
from jax.experimental.pallas import tpu as pltpu


def _round_up(n, m):
    return ((n + m - 1) // m) * m


def modelrl_kernel(x_ref,
                   w1_ref, b1_ref,
                   w2_ref, b2_ref,
                   w3_ref, b3_ref,
                   o_ref):
    """One batch tile: x_ref is (in_dim, TB); weights (out, in); biases (out, 1)."""
    x = x_ref[...]                                   # (in_dim, TB), compute dtype

    # Layer 1: tanh(W1 @ x + b1)        -> (h, TB)
    h1 = jnp.tanh(
        jnp.dot(w1_ref[...], x, preferred_element_type=jnp.float32) + b1_ref[...]
    )

    # Layer 2: tanh(W2 @ h1 + b2)       -> (h, TB)
    h1 = h1.astype(w2_ref.dtype)                     # cast only the dot operand
    h2 = jnp.tanh(
        jnp.dot(w2_ref[...], h1, preferred_element_type=jnp.float32) + b2_ref[...]
    )

    # Layer 3: W3 @ h2 + b3 (no act.)   -> (out_dim, TB), lane-dense store
    h2 = h2.astype(w3_ref.dtype)
    y = jnp.dot(w3_ref[...], h2, preferred_element_type=jnp.float32) + b3_ref[...]

    o_ref[...] = y.astype(o_ref.dtype)


def fuse_params(p, compute_dtype=jnp.float32):
    """Fuse each low-rank pair offline and cast the matmul weights.

    p holds PyTorch-layout params: K* (rank, in), D* (out, rank), b* (out,).
    Fused W = D @ K has shape (out, in); biases stay f32 as (out, 1) columns.
    """
    def fuse(d, k):
        return (d @ k).astype(compute_dtype)

    def col(b):
        return b.reshape(-1, 1).astype(jnp.float32)

    return {
        "w1": fuse(p["D1"], p["K1"]), "b1": col(p["b1"]),
        "w2": fuse(p["D2"], p["K2"]), "b2": col(p["b2"]),
        "w3": fuse(p["D3"], p["K3"]), "b3": col(p["b3"]),
    }


def modelrl_forward(x, fused, *, block_b=512):
    """x: (B, in_dim) f32.  fused: output of fuse_params.  Returns (B, out_dim) f32."""
    assert block_b % 128 == 0, "batch tile must be a multiple of 128 lanes"
    B, in_dim = x.shape
    w1, b1 = fused["w1"], fused["b1"]
    w2, b2 = fused["w2"], fused["b2"]
    w3, b3 = fused["w3"], fused["b3"]
    out_dim = w3.shape[0]
    cdt = w1.dtype                                   # compute dtype (f32 or bf16)

    # Batch on the lane axis; pad to a multiple of the batch tile (>=128).
    tb = min(block_b, _round_up(B, 128))
    b_pad = _round_up(B, tb)
    x_t = jnp.pad(x.T.astype(cdt), ((0, 0), (0, b_pad - B)))   # (in_dim, b_pad)

    full = lambda a: pl.BlockSpec(a.shape, lambda i: (0, 0))   # weights resident once

    out_t = pl.pallas_call(
        modelrl_kernel,
        out_shape=jax.ShapeDtypeStruct((out_dim, b_pad), jnp.float32),
        grid=(b_pad // tb,),
        in_specs=[
            pl.BlockSpec((in_dim, tb), lambda i: (0, i)),      # x tile, lane-dense
            full(w1), full(b1),
            full(w2), full(b2),
            full(w3), full(b3),
        ],
        out_specs=pl.BlockSpec((out_dim, tb), lambda i: (0, i)),
        compiler_params=pltpu.CompilerParams(
            # Batch tiles are independent -> shard across TensorCores on v7x.
            dimension_semantics=("parallel",),
            # Default scoped VMEM is ample for these tile sizes; raise
            # vmem_limit_bytes here only for very large block_b on v5e.
        ),
    )(x_t, w1, b1, w2, b2, w3, b3)

    return out_t[:, :B].T                                       # (B, out_dim)


def init_params(key, n_states, n_actions, h, rank):
    """Deterministic init mimicking nn.Linear default (uniform +-1/sqrt(fan_in)).

    Weights are stored in PyTorch-native (out_features, in_features) layout.
    """
    in_dim = n_states + n_actions
    out_dim = n_states + 1

    def lin(k, fan_in, fan_out, bias):
        kw, kb = jax.random.split(k)
        bound = 1.0 / (fan_in ** 0.5)
        w = jax.random.uniform(kw, (fan_out, fan_in), jnp.float32, -bound, bound)
        if bias:
            b = jax.random.uniform(kb, (fan_out,), jnp.float32, -bound, bound)
            return w, b
        return w, None

    keys = jax.random.split(key, 6)
    K1, _ = lin(keys[0], in_dim, rank, bias=False)
    D1, b1 = lin(keys[1], rank, h, bias=True)
    K2, _ = lin(keys[2], h, rank, bias=False)
    D2, b2 = lin(keys[3], rank, h, bias=True)
    K3, _ = lin(keys[4], h, rank, bias=False)
    D3, b3 = lin(keys[5], rank, out_dim, bias=True)

    return {"K1": K1, "D1": D1, "b1": b1,
            "K2": K2, "D2": D2, "b2": b2,
            "K3": K3, "D3": D3, "b3": b3}


def reference_forward(x, p):
    """Un-fused, PyTorch-faithful math (x @ K.T @ D.T + b)."""
    h1 = jnp.tanh(x @ p["K1"].T @ p["D1"].T + p["b1"])
    h2 = jnp.tanh(h1 @ p["K2"].T @ p["D2"].T + p["b2"])
    return h2 @ p["K3"].T @ p["D3"].T + p["b3"]


if __name__ == "__main__":
    # Small shapes consistent with ModelRL(learning_rate, h, n_states, n_actions, rank)
    n_states, n_actions, h, rank = 16, 4, 32, 8
    in_dim, out_dim = n_states + n_actions, n_states + 1

    key = jax.random.PRNGKey(0)
    kx, kp = jax.random.split(key)
    params = init_params(kp, n_states, n_actions, h, rank)

    # --- f32 path, single grid step (batch padded to one 128-lane tile) ---
    B1 = 8
    x1 = jax.random.normal(jax.random.fold_in(kx, 0), (B1, in_dim), jnp.float32)
    fused_f32 = fuse_params(params, jnp.float32)
    out1 = jax.block_until_ready(modelrl_forward(x1, fused_f32, block_b=128))
    ref1 = reference_forward(x1, params)
    assert out1.shape == (B1, out_dim)
    assert jnp.allclose(out1, ref1, atol=1e-4, rtol=1e-4), "f32 mismatch vs reference"

    # --- bf16 matmul path, multi-step parallel grid (200 -> 2 tiles of 128) ---
    B2 = 200
    x2 = jax.random.normal(jax.random.fold_in(kx, 1), (B2, in_dim), jnp.float32)
    fused_bf16 = fuse_params(params, jnp.bfloat16)
    out2 = jax.block_until_ready(modelrl_forward(x2, fused_bf16, block_b=128))
    ref2 = reference_forward(x2, params)
    assert out2.shape == (B2, out_dim)
    assert jnp.allclose(out2, ref2, atol=5e-2, rtol=5e-2), "bf16 mismatch vs reference"

    # TODO(synk): the Adam optimizer state built in ModelRL.__init__ is training-only;
    # this forward-pass kernel intentionally omits it.
    print("KERNEL_OK")
</pallas_src>

<mosaic_0001>
module attributes {stable_mosaic.version = 11 : i64} {
  func.func @modelrl_kernel(%arg0: i32, %arg1: memref<20x128xf32, #tpu.memory_space<vmem>>, %arg2: memref<32x20xf32, #tpu.memory_space<vmem>>, %arg3: memref<32x1xf32, #tpu.memory_space<vmem>>, %arg4: memref<32x32xf32, #tpu.memory_space<vmem>>, %arg5: memref<32x1xf32, #tpu.memory_space<vmem>>, %arg6: memref<17x32xf32, #tpu.memory_space<vmem>>, %arg7: memref<17x1xf32, #tpu.memory_space<vmem>>, %arg8: memref<17x128xf32, #tpu.memory_space<vmem>>) attributes {dimension_semantics = [#tpu.dimension_semantics<parallel>], iteration_bounds = array<i64: 1>, scalar_prefetch = 0 : i64, scratch_operands = 0 : i64, tpu.core_type = #tpu.core_type<tc>, window_params = [{transform_indices = @transform_0, window_bounds = array<i64: 20, 128>}, {pipeline_mode = #tpu.pipeline_mode<synchronous>, transform_indices = @transform_1, window_bounds = array<i64: 32, 20>}, {pipeline_mode = #tpu.pipeline_mode<synchronous>, transform_indices = @transform_2, window_bounds = array<i64: 32, 1>}, {pipeline_mode = #tpu.pipeline_mode<synchronous>, transform_indices = @transform_3, window_bounds = array<i64: 32, 32>}, {pipeline_mode = #tpu.pipeline_mode<synchronous>, transform_indices = @transform_4, window_bounds = array<i64: 32, 1>}, {pipeline_mode = #tpu.pipeline_mode<synchronous>, transform_indices = @transform_5, window_bounds = array<i64: 17, 32>}, {pipeline_mode = #tpu.pipeline_mode<synchronous>, transform_indices = @transform_6, window_bounds = array<i64: 17, 1>}, {transform_indices = @transform_7, window_bounds = array<i64: 17, 128>}]} {
    %c0 = arith.constant 0 : index
    %c0_0 = arith.constant 0 : index
    %0 = vector.load %arg1[%c0, %c0_0] : memref<20x128xf32, #tpu.memory_space<vmem>>, vector<20x128xf32>
    %c0_1 = arith.constant 0 : index
    %c0_2 = arith.constant 0 : index
    %1 = vector.load %arg2[%c0_1, %c0_2] : memref<32x20xf32, #tpu.memory_space<vmem>>, vector<32x20xf32>
    %cst = arith.constant dense<0.000000e+00> : vector<32x128xf32>
    %2 = tpu.matmul %1, %0, %cst {dimension_numbers = #tpu.dot_dimension_numbers<[1], [0], [0], [1], [0, 0, 1, 1], [], []>} : vector<32x20xf32>, vector<20x128xf32>, vector<32x128xf32> -> vector<32x128xf32>
    %c0_3 = arith.constant 0 : index
    %c0_4 = arith.constant 0 : index
    %3 = vector.load %arg3[%c0_3, %c0_4] : memref<32x1xf32, #tpu.memory_space<vmem>>, vector<32x1xf32>
    %4 = vector.broadcast %3 : vector<32x1xf32> to vector<32x128xf32>
    %5 = arith.addf %2, %4 : vector<32x128xf32>
    %6 = math.tanh %5 : vector<32x128xf32>
    %c0_5 = arith.constant 0 : index
    %c0_6 = arith.constant 0 : index
    %7 = vector.load %arg4[%c0_5, %c0_6] : memref<32x32xf32, #tpu.memory_space<vmem>>, vector<32x32xf32>
    %cst_7 = arith.constant dense<0.000000e+00> : vector<32x128xf32>
    %8 = tpu.matmul %7, %6, %cst_7 {dimension_numbers = #tpu.dot_dimension_numbers<[1], [0], [0], [1], [0, 0, 1, 1], [], []>} : vector<32x32xf32>, vector<32x128xf32>, vector<32x128xf32> -> vector<32x128xf32>
    %c0_8 = arith.constant 0 : index
    %c0_9 = arith.constant 0 : index
    %9 = vector.load %arg5[%c0_8, %c0_9] : memref<32x1xf32, #tpu.memory_space<vmem>>, vector<32x1xf32>
    %10 = vector.broadcast %9 : vector<32x1xf32> to vector<32x128xf32>
    %11 = arith.addf %8, %10 : vector<32x128xf32>
    %12 = math.tanh %11 : vector<32x128xf32>
    %c0_10 = arith.constant 0 : index
    %c0_11 = arith.constant 0 : index
    %13 = vector.load %arg6[%c0_10, %c0_11] : memref<17x32xf32, #tpu.memory_space<vmem>>, vector<17x32xf32>
    %cst_12 = arith.constant dense<0.000000e+00> : vector<17x128xf32>
    %14 = tpu.matmul %13, %12, %cst_12 {dimension_numbers = #tpu.dot_dimension_numbers<[1], [0], [0], [1], [0, 0, 1, 1], [], []>} : vector<17x32xf32>, vector<32x128xf32>, vector<17x128xf32> -> vector<17x128xf32>
    %c0_13 = arith.constant 0 : index
    %c0_14 = arith.constant 0 : index
    %15 = vector.load %arg7[%c0_13, %c0_14] : memref<17x1xf32, #tpu.memory_space<vmem>>, vector<17x1xf32>
    %16 = vector.broadcast %15 : vector<17x1xf32> to vector<17x128xf32>
    %17 = arith.addf %14, %16 : vector<17x128xf32>
    %c0_15 = arith.constant 0 : index
    %c0_16 = arith.constant 0 : index
    %18 = vector.load %arg8[%c0_15, %c0_16] : memref<17x128xf32, #tpu.memory_space<vmem>>, vector<17x128xf32>
    tpu.vector_store %arg8[%c0_15, %c0_16], %17 {strides = array<i32>} : memref<17x128xf32, #tpu.memory_space<vmem>>, vector<17x128xf32>,
    return
  }
  func.func @transform_0(%arg0: i32) -> (i32, i32) {
    %c0_i32 = arith.constant 0 : i32
    %c0_i32_0 = arith.constant 0 : i32
    return %c0_i32, %arg0 : i32, i32
  }
  func.func @transform_1(%arg0: i32) -> (i32, i32) {
    %c0_i32 = arith.constant 0 : i32
    %c0_i32_0 = arith.constant 0 : i32
    %c0_i32_1 = arith.constant 0 : i32
    return %c0_i32, %c0_i32_0 : i32, i32
  }
  func.func @transform_2(%arg0: i32) -> (i32, i32) {
    %c0_i32 = arith.constant 0 : i32
    %c0_i32_0 = arith.constant 0 : i32
    %c0_i32_1 = arith.constant 0 : i32
    return %c0_i32, %c0_i32_0 : i32, i32
  }
  func.func @transform_3(%arg0: i32) -> (i32, i32) {
    %c0_i32 = arith.constant 0 : i32
    %c0_i32_0 = arith.constant 0 : i32
    %c0_i32_1 = arith.constant 0 : i32
    return %c0_i32, %c0_i32_0 : i32, i32
  }
  func.func @transform_4(%arg0: i32) -> (i32, i32) {
    %c0_i32 = arith.constant 0 : i32
    %c0_i32_0 = arith.constant 0 : i32
    %c0_i32_1 = arith.constant 0 : i32
    return %c0_i32, %c0_i32_0 : i32, i32
  }
  func.func @transform_5(%arg0: i32) -> (i32, i32) {
    %c0_i32 = arith.constant 0 : i32
    %c0_i32_0 = arith.constant 0 : i32
    %c0_i32_1 = arith.constant 0 : i32
    return %c0_i32, %c0_i32_0 : i32, i32
  }
  func.func @transform_6(%arg0: i32) -> (i32, i32) {
    %c0_i32 = arith.constant 0 : i32
    %c0_i32_0 = arith.constant 0 : i32
    %c0_i32_1 = arith.constant 0 : i32
    return %c0_i32, %c0_i32_0 : i32, i32
  }
  func.func @transform_7(%arg0: i32) -> (i32, i32) {
    %c0_i32 = arith.constant 0 : i32
    %c0_i32_0 = arith.constant 0 : i32
    return %c0_i32, %arg0 : i32, i32
  }
}

</mosaic_0001>

<llo_original>
// kernel: tpu_custom_call.1
$region0: #{tpu_custom_call.1}
  #allocation0 [shape = 'u32[]', space=smem, size = 0x4, offset = 0x4, fixed_abs, tag = 'smem constant byte address 0x4 - core index']
  #allocation1 [shape = 'u32[72,128]{1,0:T(1,128)}', space=vmem, size = 0x9000, scoped, tag = 'internal scratch']
  %s0 = inlined_call_operand.vmem [shape: f32[20,128], index: 0, kind: input, shape index: {}]
  %s1 = inlined_call_operand.vmem [shape: f32[32,20], index: 1, kind: input, shape index: {}]
  %s2 = inlined_call_operand.vmem [shape: f32[32,1], index: 2, kind: input, shape index: {}]
  %s3 = inlined_call_operand.vmem [shape: f32[32,32], index: 3, kind: input, shape index: {}]
  %s4 = inlined_call_operand.vmem [shape: f32[32,1], index: 4, kind: input, shape index: {}]
  %s5 = inlined_call_operand.vmem [shape: f32[17,32], index: 5, kind: input, shape index: {}]
  %s6 = inlined_call_operand.vmem [shape: f32[17,1], index: 6, kind: input, shape index: {}]
  %s7 = inlined_call_operand.hbm [shape: f32[17,128], index: 7, kind: output, shape index: {}]
  %s8 = sld [smem:[#allocation0]]
  $region38: #{tpu_custom_call.1} parent=0
    _
  %s10 = ssub.s32 1, %s8
  %s11 = scalar_select 0, %s10, %s8
  $region1: #{tpu_custom_call.1} parent=0
    #allocation2 [shape = 'u8[12288]{0}', space=vmem, size = 0x3000, scoped, tag = 'output window, operand 0, single buffered']
    #allocation3 [shape = 's32[1]{0}', space=sflag, size = 0x4, scoped, tag = 'scoped memory for tpu_custom_call.1']
    %12 = vsyncpa [#allocation3], 0
    // Predicated region
    $region2: #{tpu_custom_call.1} parent=1 // pred_check
      _
    $region3: #{tpu_custom_call.1} parent=1 // pred_check_branch
      %14 = sbr.rel (0) target = $region5
    $region4: #{tpu_custom_call.1} parent=1 // pred_region
      _
    $region5: #{tpu_custom_call.1} parent=1 // pred_fallthru
      _
    // Predicated region
    $region6: #{tpu_custom_call.1} parent=1 // pred_check
      _
    $region7: #{tpu_custom_call.1} parent=1 // pred_check_branch
      %16 = sbr.rel (0) target = $region9
    $region8: #{tpu_custom_call.1} parent=1 // pred_region
      _
    $region9: #{tpu_custom_call.1} parent=1 // pred_fallthru
      _
    // Predicated region
    $region10: #{tpu_custom_call.1} parent=1 // pred_check
      _
    $region11: #{tpu_custom_call.1} parent=1 // pred_check_branch
      %18 = sbr.rel (0) target = $region13
    $region12: #{tpu_custom_call.1} parent=1 // pred_region
      _
    $region13: #{tpu_custom_call.1} parent=1 // pred_fallthru
      _
    // Predicated region
    $region14: #{tpu_custom_call.1} parent=1 // pred_check
      _
    $region15: #{tpu_custom_call.1} parent=1 // pred_check_branch
      %20 = sbr.rel (0) target = $region17
    $region16: #{tpu_custom_call.1} parent=1 // pred_region
      _
    $region17: #{tpu_custom_call.1} parent=1 // pred_fallthru
      _
    // Predicated region
    $region18: #{tpu_custom_call.1} parent=1 // pred_check
      _
    $region19: #{tpu_custom_call.1} parent=1 // pred_check_branch
      %22 = sbr.rel (0) target = $region21
    $region20: #{tpu_custom_call.1} parent=1 // pred_region
      _
    $region21: #{tpu_custom_call.1} parent=1 // pred_fallthru
      _
    // Predicated region
    $region22: #{tpu_custom_call.1} parent=1 // pred_check
      _
    $region23: #{tpu_custom_call.1} parent=1 // pred_check_branch
      %24 = sbr.rel (0) target = $region25
    $region24: #{tpu_custom_call.1} parent=1 // pred_region
      _
    $region25: #{tpu_custom_call.1} parent=1 // pred_fallthru
      _
    // Predicated region
    $region26: #{tpu_custom_call.1} parent=1 // pred_check
      _
    $region27: #{tpu_custom_call.1} parent=1 // pred_check_branch
      %26 = sbr.rel (0) target = $region29
    $region28: #{tpu_custom_call.1} parent=1 // pred_region
      _
    $region29: #{tpu_custom_call.1} parent=1 // pred_fallthru
      _
    %v27 = vld [vmem:[%s0] sm:$0xff]
    %v28 = vld [vmem:[%s0 + $0x8] sm:$0xff]
    %v29 = vld [vmem:[%s0 + $0x10] sm:$0xf]
    %v30 = vld [vmem:[%s1] sm:$0xff]
    %v31 = vld [vmem:[%s1 + $0x8] sm:$0xff]
    %v32 = vld [vmem:[%s1 + $0x10] sm:$0xff]
    %v33 = vld [vmem:[%s1 + $0x18] sm:$0xff]
    %v34 = vld [vmem:[%s2] sm:$0xff]
    %v35 = vld [vmem:[%s2 + $0x8] sm:$0xff]
    %v36 = vld [vmem:[%s2 + $0x10] sm:$0xff]
    %v37 = vld [vmem:[%s2 + $0x18] sm:$0xff]
    %39 = vset.pattern.permute.xlu0 0
    %40 = vperm.xlu0 %39, %v34
    %v41 = vpop.permute.xlu0 %40
    %44 = vset.pattern.permute.xlu0 0
    %45 = vperm.xlu0 %44, %v35
    %v46 = vpop.permute.xlu0 %45
    %49 = vset.pattern.permute.xlu0 0
    %50 = vperm.xlu0 %49, %v36
    %v51 = vpop.permute.xlu0 %50
    %54 = vset.pattern.permute.xlu0 0
    %55 = vperm.xlu0 %54, %v37
    %v56 = vpop.permute.xlu0 %55
    %vm58 = vcmask 162816
    %v60 = vsel %vm58, %v30, 0
    %v63 = vsel %vm58, %v31, 0
    %v66 = vsel %vm58, %v32, 0
    %v69 = vsel %vm58, %v33, 0
    %vm71 = vcmask 1043456
    %v73 = vsel %vm71, %v29, 0
    %75 = vmatpush.msra.mxu0 0.0
    %76 = vmatpush.msra.mxu0 0.0
    %77 = vmatpush.msra.mxu0 0.0
    %78 = vmatpush.msra.mxu0 0.0
    %79 = vmatpush.msra.mxu0 0.0
    %80 = vmatpush.msra.mxu0 0.0
    %81 = vmatpush.msra.mxu0 0.0
    %82 = vmatpush.msra.mxu0 0.0
    %83 = vmatpush.msra.mxu0 0.0
    %84 = vmatpush.msra.mxu0 0.0
    %85 = vmatpush.msra.mxu0 0.0
    %86 = vmatpush.msra.mxu0 0.0
    %87 = vmatpush.msra.mxu0 0.0
    %88 = vmatpush.msra.mxu0 %v73
    %89 = vmatpush.msra.mxu0 %v28
    %90 = vmatpush.msra.mxu0 %v27
    %91 = vmatmul.f32.gmra.mxu0 %v60
    %v92 = vpop.f32.mrf.mxu0
    %v93 = vadd.f32 %v41, %v92
    %94 = vmatmul.f32.gmra.mxu0 %v63
    %v95 = vpop.f32.mrf.mxu0
    %v96 = vadd.f32 %v46, %v95
    %97 = vmatmul.f32.gmra.mxu0 %v66
    %v98 = vpop.f32.mrf.mxu0
    %v99 = vadd.f32 %v51, %v98
    %100 = vmatmul.f32.gmra.mxu0 %v69
    %v101 = vpop.f32.mrf.mxu0
    %v102 = vadd.f32 %v56, %v101
    %103 = vdwg.mxu0
    %v104 = vtanh.pop %v93
    %v105 = vtanh.pop %v96
    %v106 = vtanh.pop %v99
    %v107 = vtanh.pop %v102
    %v108 = vld [vmem:[%s3] sm:$0xff]
    %v109 = vld [vmem:[%s3 + $0x8] sm:$0xff]
    %v110 = vld [vmem:[%s3 + $0x10] sm:$0xff]
    %v111 = vld [vmem:[%s3 + $0x18] sm:$0xff]
    %v112 = vld [vmem:[%s4] sm:$0xff]
    %v113 = vld [vmem:[%s4 + $0x8] sm:$0xff]
    %v114 = vld [vmem:[%s4 + $0x10] sm:$0xff]
    %v115 = vld [vmem:[%s4 + $0x18] sm:$0xff]
    %117 = vset.pattern.permute.xlu0 0
    %118 = vperm.xlu0 %117, %v112
    %v119 = vpop.permute.xlu0 %118
    %122 = vset.pattern.permute.xlu0 0
    %123 = vperm.xlu0 %122, %v113
    %v124 = vpop.permute.xlu0 %123
    %127 = vset.pattern.permute.xlu0 0
    %128 = vperm.xlu0 %127, %v114
    %v129 = vpop.permute.xlu0 %128
    %132 = vset.pattern.permute.xlu0 0
    %133 = vperm.xlu0 %132, %v115
    %v134 = vpop.permute.xlu0 %133
    %vm136 = vcmask 261120
    %v138 = vsel %vm136, %v108, 0
    %v141 = vsel %vm136, %v109, 0
    %v144 = vsel %vm136, %v110, 0
    %v147 = vsel %vm136, %v111, 0
    %149 = vmatpush.msra.mxu0 0.0
    %150 = vmatpush.msra.mxu0 0.0
    %151 = vmatpush.msra.mxu0 0.0
    %152 = vmatpush.msra.mxu0 0.0
    %153 = vmatpush.msra.mxu0 0.0
    %154 = vmatpush.msra.mxu0 0.0
    %155 = vmatpush.msra.mxu0 0.0
    %156 = vmatpush.msra.mxu0 0.0
    %157 = vmatpush.msra.mxu0 0.0
    %158 = vmatpush.msra.mxu0 0.0
    %159 = vmatpush.msra.mxu0 0.0
    %160 = vmatpush.msra.mxu0 0.0
    %161 = vmatpush.msra.mxu0 %v107
    %162 = vmatpush.msra.mxu0 %v106
    %163 = vmatpush.msra.mxu0 %v105
    %164 = vmatpush.msra.mxu0 %v104
    %165 = vmatmul.f32.gmra.mxu0 %v138
    %v166 = vpop.f32.mrf.mxu0
    %v167 = vadd.f32 %v119, %v166
    %168 = vmatmul.f32.gmra.mxu0 %v141
    %v169 = vpop.f32.mrf.mxu0
    %v170 = vadd.f32 %v124, %v169
    %171 = vmatmul.f32.gmra.mxu0 %v144
    %v172 = vpop.f32.mrf.mxu0
    %v173 = vadd.f32 %v129, %v172
    %174 = vmatmul.f32.gmra.mxu0 %v147
    %v175 = vpop.f32.mrf.mxu0
    %v176 = vadd.f32 %v134, %v175
    %177 = vdwg.mxu0
    %v178 = vtanh.pop %v167
    %v179 = vtanh.pop %v170
    %v180 = vtanh.pop %v173
    %v181 = vtanh.pop %v176
    %v182 = vld [vmem:[%s5] sm:$0xff]
    %v183 = vld [vmem:[%s5 + $0x8] sm:$0xff]
    %v184 = vld [vmem:[%s5 + $0x10] sm:$0x1]
    %v185 = vld [vmem:[%s6] sm:$0xff]
    %v186 = vld [vmem:[%s6 + $0x8] sm:$0xff]
    %v187 = vld [vmem:[%s6 + $0x10] sm:$0x1]
    %189 = vset.pattern.permute.xlu0 0
    %190 = vperm.xlu0 %189, %v185
    %v191 = vpop.permute.xlu0 %190
    %194 = vset.pattern.permute.xlu0 0
    %195 = vperm.xlu0 %194, %v186
    %v196 = vpop.permute.xlu0 %195
    %199 = vset.pattern.permute.xlu0 0
    %200 = vperm.xlu0 %199, %v187
    %v201 = vpop.permute.xlu0 %200
    %v204 = vsel %vm136, %v182, 0
    %v207 = vsel %vm136, %v183, 0
    %v210 = vsel %vm136, %v184, 0
    %212 = vmatpush.msra.mxu0 0.0
    %213 = vmatpush.msra.mxu0 0.0
    %214 = vmatpush.msra.mxu0 0.0
    %215 = vmatpush.msra.mxu0 0.0
    %216 = vmatpush.msra.mxu0 0.0
    %217 = vmatpush.msra.mxu0 0.0
    %218 = vmatpush.msra.mxu0 0.0
    %219 = vmatpush.msra.mxu0 0.0
    %220 = vmatpush.msra.mxu0 0.0
    %221 = vmatpush.msra.mxu0 0.0
    %222 = vmatpush.msra.mxu0 0.0
    %223 = vmatpush.msra.mxu0 0.0
    %224 = vmatpush.msra.mxu0 %v181
    %225 = vmatpush.msra.mxu0 %v180
    %226 = vmatpush.msra.mxu0 %v179
    %227 = vmatpush.msra.mxu0 %v178
    %228 = vmatmul.f32.gmra.mxu0 %v204
    %v229 = vpop.f32.mrf.mxu0
    %v230 = vadd.f32 %v191, %v229
    %231 = vmatmul.f32.gmra.mxu0 %v207
    %v232 = vpop.f32.mrf.mxu0
    %v233 = vadd.f32 %v196, %v232
    %234 = vmatmul.f32.gmra.mxu0 %v210
    %v235 = vpop.f32.mrf.mxu0
    %v236 = vadd.f32 %v201, %v235
    %237 = vdwg.mxu0
    %238 = vst [vmem:[#allocation2] sm:$0xff] %v230
    %239 = vst [vmem:[#allocation2 + $0x8] sm:$0xff] %v233
    %240 = vst [vmem:[#allocation2 + $0x10] sm:$0x1] %v236
    // Predicated region
    $region30: #{tpu_custom_call.1} parent=1 // pred_check
      _
    $region31: #{tpu_custom_call.1} parent=1 // pred_check_branch
      %242 = sbr.rel (0) target = $region33
    $region32: #{tpu_custom_call.1} parent=1 // pred_region
      %244 = vsyncadd [#allocation3], 0
      %s245 = sshll.u32 [#allocation2], 4
      %s246 = int_to_ptr.vmem [resolvable:$true] %s245
      %s247 = sshll.u32 %s7, 4
      %s248 = int_to_ptr.hbm [resolvable:$true] %s247
      %253 = dma.vmem_to_hbm [thread:$0]  %s246, 384, %s248, [#allocation3], 128, 128, 8
    $region33: #{tpu_custom_call.1} parent=1 // pred_fallthru
      _
    // Predicated region
    $region34: #{tpu_custom_call.1} parent=1 // pred_check
      _
    $region35: #{tpu_custom_call.1} parent=1 // pred_check_branch
      %255 = sbr.rel (0) target = $region37
    $region36: #{tpu_custom_call.1} parent=1 // pred_region
      %257 = dma.done [#allocation3], 384
    $region37: #{tpu_custom_call.1} parent=1 // pred_fallthru
      _
    %258 = vsyncpa [#allocation3], 1

</llo_original>
